<compile_context>
chip_gen: v5e
topology: v5e:2x2
jax: 0.10.0
libtpu: 0.0.40
codegen_flags: <defaults>
</compile_context>

<pallas_src>
import functools

import jax
import jax.numpy as jnp
from jax import lax
from jax.experimental import pallas as pl
from jax.experimental.pallas import tpu as pltpu


def _ce_label_smooth_kernel(x_ref, t_ref, o_ref, *, num_classes, epsilon,
                            n_true, tile_n, tiles_per_core):
    # x_ref: (tile_n, C) logits tile; t_ref: (tile_n, 1) int32 labels tile
    # o_ref: (1, tile_n, 1) f32 per-core per-row partial-loss accumulator.
    core = pl.program_id(0)
    i = pl.program_id(1)

    @pl.when(i == 0)
    def _init():
        o_ref[...] = jnp.zeros_like(o_ref)

    x = x_ref[...].astype(jnp.float32)                      # (tile_n, C)
    t = t_ref[...]                                          # (tile_n, 1) int32

    # Numerically stable log-softmax pieces (no full log_probs materialized).
    m = jnp.max(x, axis=1, keepdims=True)                   # (tile_n, 1)
    shifted = x - m                                         # (tile_n, C)
    lse = jnp.log(jnp.sum(jnp.exp(shifted), axis=1, keepdims=True))

    # Fused closed-form label-smoothing reduction:
    #   sum_c(smoothed_c * log_prob_c) = sum_c(w_c * shifted_c) - lse,
    #   w_c = eps/C + (1-eps)*[c == t],  sum_c w_c = 1.
    eps_over_c = float(epsilon) / float(num_classes)
    class_ids = lax.broadcasted_iota(jnp.int32, (1, num_classes), 1)  # (1, C)
    w = jnp.where(class_ids == t, 1.0 - epsilon + eps_over_c, eps_over_c)
    weighted = jnp.sum(w * shifted, axis=1, keepdims=True)  # (tile_n, 1)
    per_sample = lse - weighted                             # (tile_n, 1)

    # Mask rows beyond the true N (partial final tile / clamped duplicate
    # tiles of the dual-core split).  Must stay a select: garbage/NaN logits
    # in the padded region are discarded, never multiplied.
    row0 = (core * tiles_per_core + i) * tile_n
    row_ids = lax.broadcasted_iota(jnp.int32, per_sample.shape, 0) + row0
    per_sample = jnp.where(row_ids < n_true, per_sample, 0.0)

    # Vector accumulation directly into the resident output block.
    o_ref[...] += per_sample[None]                          # (1, tile_n, 1)


def _vmem_capacity_bytes():
    try:
        return int(pltpu.get_tpu_info().vmem_capacity_bytes)
    except Exception:
        return 64 * 1024 * 1024  # conservative: v7x per-TC physical VMEM


def _choose_tile_n(n, c, itemsize, vmem_cap):
    # Sublane alignment of the logits tile (f32 -> 8, bf16 -> 16, int8 -> 32).
    align = {4: 8, 2: 16, 1: 32}.get(itemsize, 8)
    # Per-buffer budget sized in f32 bytes (in-kernel temporaries are f32
    # regardless of input dtype): ~8 MiB on 128-MiB-VMEM chips (v5e/v6e),
    # ~4 MiB on v7x (64 MiB / TC).
    budget_bytes = min(8 << 20, max(4 << 20, vmem_cap // 16))
    tile = max(budget_bytes // max(c * 4, 1), 1)
    tile = max(align, (min(tile, 2048) // align) * align)
    n_aligned = pl.cdiv(n, align) * align
    return min(tile, n_aligned)


def cross_entropy_label_smooth(inputs, targets, *, num_classes, epsilon,
                               tile_n=None, num_cores=None,
                               small_problem_to_xla=False):
    """inputs: (N, C) float logits (f32/bf16); targets: (N,) ints -> f32 loss."""
    n, c = inputs.shape
    assert c == num_classes
    itemsize = jnp.dtype(inputs.dtype).itemsize

    # Explicit tiny-shape fallback: lanes underfilled (C < 128) or the whole
    # problem is a few hundred KiB -> plain XLA wins.  Off by default so the
    # Pallas path is exercised here.
    if small_problem_to_xla and (c < 128 or n * c * itemsize < (256 << 10)):
        return _reference(inputs, targets, num_classes, epsilon)

    vmem_cap = _vmem_capacity_bytes()
    align = {4: 8, 2: 16, 1: 32}.get(itemsize, 8)
    if tile_n is None:
        tile_n = _choose_tile_n(n, c, itemsize, vmem_cap)
    else:
        tile_n = max(align, pl.cdiv(tile_n, align) * align)

    num_tiles = pl.cdiv(n, tile_n)
    if num_cores is None:
        # 2 TensorCores on v7x; on single-TC chips the extra axis just
        # iterates sequentially (negligible overhead).
        num_cores = 2 if num_tiles >= 2 else 1
    tiles_per_core = pl.cdiv(num_tiles, num_cores)

    # When the tile count doesn't split evenly, clamp the block index so the
    # surplus steps re-read the last valid tile; their logical rows are >= N
    # and the in-kernel select zeroes their contribution.
    def tile_index(core, i):
        idx = core * tiles_per_core + i
        if num_cores * tiles_per_core != num_tiles:
            idx = jnp.minimum(idx, num_tiles - 1)
        return idx

    t = targets.astype(jnp.int32).reshape(n, 1)

    kernel = functools.partial(
        _ce_label_smooth_kernel,
        num_classes=num_classes,
        epsilon=float(epsilon),
        n_true=n,
        tile_n=tile_n,
        tiles_per_core=tiles_per_core,
    )

    # Generous but safe scoped-VMEM limit: double-buffered native-dtype input
    # tiles + a few f32 temporaries, capped well below physical capacity.
    in_buf = tile_n * c * itemsize
    f32_buf = tile_n * c * 4
    vmem_limit = 2 * in_buf + 4 * f32_buf + (4 << 20)
    vmem_limit = int(max(16 << 20, min(vmem_limit, vmem_cap * 3 // 4)))

    partial_sums = pl.pallas_call(
        kernel,
        out_shape=jax.ShapeDtypeStruct((num_cores, tile_n, 1), jnp.float32),
        grid_spec=pltpu.PrefetchScalarGridSpec(
            num_scalar_prefetch=0,
            grid=(num_cores, tiles_per_core),
            in_specs=[
                pl.BlockSpec((tile_n, c), lambda core, i: (tile_index(core, i), 0)),
                pl.BlockSpec((tile_n, 1), lambda core, i: (tile_index(core, i), 0)),
            ],
            # Per-core resident accumulator block (reduction along axis 1).
            out_specs=pl.BlockSpec((1, tile_n, 1), lambda core, i: (core, 0, 0)),
        ),
        compiler_params=pltpu.CompilerParams(
            dimension_semantics=("parallel", "arbitrary"),
            vmem_limit_bytes=vmem_limit,
        ),
        cost_estimate=pl.CostEstimate(
            flops=6 * n * c,
            transcendentals=n * c + n,
            bytes_accessed=n * c * itemsize + n * 4 + num_cores * tile_n * 4,
        ),
    )(inputs, t)

    # Final tiny cross-core / cross-row reduction + mean in plain XLA.
    return jnp.sum(partial_sums) / n


def _reference(inputs, targets, num_classes, epsilon):
    # Pure-JAX reference matching the PyTorch module (also the XLA fallback).
    x = inputs.astype(jnp.float32)
    log_probs = jax.nn.log_softmax(x, axis=1)
    one_hot = jax.nn.one_hot(targets, num_classes, dtype=jnp.float32)
    smoothed = (1.0 - epsilon) * one_hot + epsilon / num_classes
    return jnp.mean(jnp.sum(-smoothed * log_probs, axis=1))


if __name__ == "__main__":
    key = jax.random.PRNGKey(0)
    k1, k2, k3, k4, k5, k6 = jax.random.split(key, 6)
    eps = 0.1

    # Case 1: tiny single-tile shape matching the module's convention.
    C1, N1 = 32, 8
    x1 = jax.random.normal(k1, (N1, C1), dtype=jnp.float32)
    y1 = jax.random.randint(k2, (N1,), 0, C1, dtype=jnp.int32)
    l1 = jax.block_until_ready(
        cross_entropy_label_smooth(x1, y1, num_classes=C1, epsilon=eps))
    r1 = _reference(x1, y1, C1, eps)
    assert jnp.allclose(l1, r1, atol=5e-5, rtol=5e-5), (l1, r1)

    # Case 2: odd tile count + partial final tile -> exercises the clamped
    # dual-core split and select-based row masking (no wrapper-side pad).
    C2, N2 = 128, 20
    x2 = jax.random.normal(k3, (N2, C2), dtype=jnp.float32)
    y2 = jax.random.randint(k4, (N2,), 0, C2, dtype=jnp.int32)
    l2 = jax.block_until_ready(cross_entropy_label_smooth(
        x2, y2, num_classes=C2, epsilon=eps, tile_n=8))
    r2 = _reference(x2, y2, C2, eps)
    assert jnp.allclose(l2, r2, atol=5e-5, rtol=5e-5), (l2, r2)

    # Case 3: bf16 logits streamed natively, even dual-core split (4 tiles).
    C3, N3 = 256, 64
    x3 = jax.random.normal(k5, (N3, C3), dtype=jnp.float32).astype(jnp.bfloat16)
    y3 = jax.random.randint(k6, (N3,), 0, C3, dtype=jnp.int32)
    l3 = jax.block_until_ready(cross_entropy_label_smooth(
        x3, y3, num_classes=C3, epsilon=eps, tile_n=16))
    r3 = _reference(x3, y3, C3, eps)
    assert jnp.allclose(l3, r3, atol=1e-4, rtol=1e-4), (l3, r3)

    print("KERNEL_OK")
</pallas_src>

<mosaic_0001>
module attributes {stable_mosaic.version = 11 : i64} {
  func.func @_ce_label_smooth_kernel(%arg0: i32, %arg1: i32, %arg2: memref<8x32xf32, #tpu.memory_space<vmem>>, %arg3: memref<8x1xi32, #tpu.memory_space<vmem>>, %arg4: memref<1x8x1xf32, #tpu.memory_space<vmem>>) attributes {dimension_semantics = [#tpu.dimension_semantics<parallel>, #tpu.dimension_semantics<arbitrary>], iteration_bounds = array<i64: 1, 1>, scalar_prefetch = 0 : i64, scratch_operands = 0 : i64, tpu.core_type = #tpu.core_type<tc>, window_params = [{transform_indices = @transform_0, window_bounds = array<i64: 8, 32>}, {transform_indices = @transform_1, window_bounds = array<i64: 8, 1>}, {transform_indices = @transform_2, window_bounds = array<i64: 1, 8, 1>}]} {
    %c0_i32 = arith.constant 0 : i32
    %0 = arith.cmpi eq, %arg1, %c0_i32 : i32
    %1 = arith.extui %0 : i1 to i32
    %c0_i32_0 = arith.constant 0 : i32
    %2 = arith.cmpi ne, %1, %c0_i32_0 : i32
    scf.if %2 {
      %cst_16 = arith.constant 0.000000e+00 : f32
      %38 = vector.broadcast %cst_16 : f32 to vector<1x8x1xf32>
      %c0_17 = arith.constant 0 : index
      %c0_18 = arith.constant 0 : index
      %c0_19 = arith.constant 0 : index
      %39 = vector.load %arg4[%c0_17, %c0_18, %c0_19] : memref<1x8x1xf32, #tpu.memory_space<vmem>>, vector<1x8x1xf32>
      tpu.vector_store %arg4[%c0_17, %c0_18, %c0_19], %38 {strides = array<i32>} : memref<1x8x1xf32, #tpu.memory_space<vmem>>, vector<1x8x1xf32>,
    } else {
    }
    %c0 = arith.constant 0 : index
    %c0_1 = arith.constant 0 : index
    %3 = vector.load %arg2[%c0, %c0_1] : memref<8x32xf32, #tpu.memory_space<vmem>>, vector<8x32xf32>
    %c0_2 = arith.constant 0 : index
    %c0_3 = arith.constant 0 : index
    %4 = vector.load %arg3[%c0_2, %c0_3] : memref<8x1xi32, #tpu.memory_space<vmem>>, vector<8x1xi32>
    %cst = arith.constant dense<0xFF800000> : vector<8xf32>
    %5 = vector.multi_reduction <maximumf>, %3, %cst [1] : vector<8x32xf32> to vector<8xf32>
    %6 = vector.shape_cast %5 : vector<8xf32> to vector<8x1xf32>
    %7 = vector.broadcast %6 : vector<8x1xf32> to vector<8x32xf32>
    %8 = arith.subf %3, %7 : vector<8x32xf32>
    %9 = math.exp %8 : vector<8x32xf32>
    %cst_4 = arith.constant dense<0.000000e+00> : vector<8xf32>
    %10 = vector.multi_reduction <add>, %9, %cst_4 [1] : vector<8x32xf32> to vector<8xf32>
    %11 = vector.shape_cast %10 : vector<8xf32> to vector<8x1xf32>
    %12 = math.log %11 : vector<8x1xf32>
    %13 = tpu.iota {dimensions = array<i32: 1>} : vector<1x32xi32>
    %14 = vector.broadcast %13 : vector<1x32xi32> to vector<8x32xi32>
    %15 = vector.broadcast %4 : vector<8x1xi32> to vector<8x32xi32>
    %16 = arith.cmpi eq, %14, %15 : vector<8x32xi32>
    %cst_5 = arith.constant 0.903124988 : f32
    %cst_6 = arith.constant 3.125000e-03 : f32
    %17 = vector.broadcast %cst_5 : f32 to vector<8x32xf32>
    %18 = vector.broadcast %cst_6 : f32 to vector<8x32xf32>
    %19 = arith.select %16, %17, %18 : vector<8x32xi1>, vector<8x32xf32>
    %20 = arith.mulf %19, %8 : vector<8x32xf32>
    %cst_7 = arith.constant dense<0.000000e+00> : vector<8xf32>
    %21 = vector.multi_reduction <add>, %20, %cst_7 [1] : vector<8x32xf32> to vector<8xf32>
    %22 = vector.shape_cast %21 : vector<8xf32> to vector<8x1xf32>
    %23 = arith.subf %12, %22 : vector<8x1xf32>
    %c1_i32 = arith.constant 1 : i32
    %24 = arith.muli %arg0, %c1_i32 : i32
    %25 = arith.addi %24, %arg1 : i32
    %c8_i32 = arith.constant 8 : i32
    %26 = arith.muli %25, %c8_i32 : i32
    %27 = tpu.iota {dimensions = array<i32: 0>} : vector<8x1xi32>
    %28 = vector.broadcast %26 : i32 to vector<8x1xi32>
    %29 = arith.addi %27, %28 : vector<8x1xi32>
    %c8_i32_8 = arith.constant 8 : i32
    %30 = vector.broadcast %c8_i32_8 : i32 to vector<8x1xi32>
    %31 = arith.cmpi slt, %29, %30 : vector<8x1xi32>
    %cst_9 = arith.constant 0.000000e+00 : f32
    %32 = vector.broadcast %cst_9 : f32 to vector<8x1xf32>
    %33 = arith.select %31, %23, %32 : vector<8x1xi1>, vector<8x1xf32>
    %c0_10 = arith.constant 0 : index
    %c0_11 = arith.constant 0 : index
    %c0_12 = arith.constant 0 : index
    %34 = vector.load %arg4[%c0_10, %c0_11, %c0_12] : memref<1x8x1xf32, #tpu.memory_space<vmem>>, vector<1x8x1xf32>
    %35 = vector.shape_cast %33 : vector<8x1xf32> to vector<1x8x1xf32>
    %36 = arith.addf %34, %35 : vector<1x8x1xf32>
    %c0_13 = arith.constant 0 : index
    %c0_14 = arith.constant 0 : index
    %c0_15 = arith.constant 0 : index
    %37 = vector.load %arg4[%c0_13, %c0_14, %c0_15] : memref<1x8x1xf32, #tpu.memory_space<vmem>>, vector<1x8x1xf32>
    tpu.vector_store %arg4[%c0_13, %c0_14, %c0_15], %36 {strides = array<i32>} : memref<1x8x1xf32, #tpu.memory_space<vmem>>, vector<1x8x1xf32>,
    return
  }
  func.func @transform_0(%arg0: i32, %arg1: i32) -> (i32, i32) {
    %c1_i32 = arith.constant 1 : i32
    %0 = arith.muli %arg0, %c1_i32 : i32
    %1 = arith.addi %0, %arg1 : i32
    %c0_i32 = arith.constant 0 : i32
    %c0_i32_0 = arith.constant 0 : i32
    return %1, %c0_i32 : i32, i32
  }
  func.func @transform_1(%arg0: i32, %arg1: i32) -> (i32, i32) {
    %c1_i32 = arith.constant 1 : i32
    %0 = arith.muli %arg0, %c1_i32 : i32
    %1 = arith.addi %0, %arg1 : i32
    %c0_i32 = arith.constant 0 : i32
    %c0_i32_0 = arith.constant 0 : i32
    return %1, %c0_i32 : i32, i32
  }
  func.func @transform_2(%arg0: i32, %arg1: i32) -> (i32, i32, i32) {
    %c0_i32 = arith.constant 0 : i32
    %c0_i32_0 = arith.constant 0 : i32
    %c0_i32_1 = arith.constant 0 : i32
    return %arg0, %c0_i32, %c0_i32_0 : i32, i32, i32
  }
}

</mosaic_0001>

<llo_original>
// kernel: tpu_custom_call.1
$region0: #{tpu_custom_call.1}
  #allocation0 [shape = 'u32[]', space=smem, size = 0x4, offset = 0x4, fixed_abs, tag = 'smem constant byte address 0x4 - core index']
  #allocation1 [shape = 'u32[72,128]{1,0:T(1,128)}', space=vmem, size = 0x9000, scoped, tag = 'internal scratch']
  %s0 = inlined_call_operand.vmem [shape: f32[8,32], index: 0, kind: input, shape index: {}]
  %s1 = inlined_call_operand.vmem [shape: s32[8,1], index: 1, kind: input, shape index: {}]
  %s2 = inlined_call_operand.vmem [shape: f32[1,8,1], index: 2, kind: output, shape index: {}]
  %s3 = sld [smem:[#allocation0]]
  $region22: #{tpu_custom_call.1} parent=0
    _
  %s5 = ssub.s32 1, %s3
  %s6 = scalar_select 0, %s5, %s3
  // Predicated region
  $region2: #{tpu_custom_call.1} parent=0 // pred_check
    _
  $region3: #{tpu_custom_call.1} parent=0 // pred_check_branch
    %8 = sbr.rel (0) target = $region5
  $region4: #{tpu_custom_call.1} parent=0 // pred_region
    %s9 = sadd.s32 0, 0
    %p10 = scmp.lt.s32.totalorder %s9, 0
    %s11 = scalar_select %p10, %s9, 0
    %s12 = smul.addr %s11, 8
    %s13 = scalar_lea.vmem %s0, %s12
    %s14 = sadd.s32 0, 0
  $region5: #{tpu_custom_call.1} parent=0 // pred_fallthru
    _
  // Predicated region
  $region6: #{tpu_custom_call.1} parent=0 // pred_check
    _
  $region7: #{tpu_custom_call.1} parent=0 // pred_check_branch
    %16 = sbr.rel (0) target = $region9
  $region8: #{tpu_custom_call.1} parent=0 // pred_region
    %s17 = sadd.s32 0, 0
    %p18 = scmp.lt.s32.totalorder %s17, 0
    %s19 = scalar_select %p18, %s17, 0
    %s20 = smul.addr %s19, 8
    %s21 = scalar_lea.vmem %s1, %s20
    %s22 = sadd.s32 0, 0
  $region9: #{tpu_custom_call.1} parent=0 // pred_fallthru
    _
  %s23 = sadd.s32 0, 0
  %p24 = scmp.lt.s32.totalorder %s23, 0
  %s25 = scalar_select %p24, %s23, 0
  %s26 = smul.addr %s25, 8
  %s27 = scalar_lea.vmem %s0, %s26
  %s28 = sadd.s32 0, 0
  %p29 = scmp.lt.s32.totalorder %s28, 0
  %s30 = scalar_select %p29, %s28, 0
  %s31 = smul.addr %s30, 8
  %s32 = scalar_lea.vmem %s1, %s31
  %s33 = sadd.s32 0, 0
  %p34 = scmp.lt.s32.totalorder %s33, 0
  %s35 = scalar_select %p34, %s33, 0
  %s36 = smul.addr %s35, 8
  %s37 = scalar_lea.vmem %s0, %s36
  %s38 = sadd.s32 0, 0
  %s39 = sadd.s32 0, 0
  %p40 = scmp.lt.s32.totalorder %s39, 0
  %s41 = scalar_select %p40, %s39, 0
  %s42 = smul.addr %s41, 8
  %s43 = scalar_lea.vmem %s1, %s42
  %s44 = sadd.s32 0, 0
  %p45 = scmp.eq.s32.totalorder 0, 0
  // Predicated region
  $region10: #{tpu_custom_call.1} parent=0 // pred_check
    %p46 = pneg %p45
  $region11: #{tpu_custom_call.1} parent=0 // pred_check_branch
    %48 = sbr.rel (%p46) target = $region13
  $region12: #{tpu_custom_call.1} parent=0 // pred_region
    %vm49 = vcmask 7168
    %50 = vst.msk [vmem:[%s2] sm:$0xff] %vm49, 0.0
  $region13: #{tpu_custom_call.1} parent=0 // pred_fallthru
    _
  %v51 = vld [vmem:[%s37] sm:$0xff]
  %v52 = vld [vmem:[%s43] sm:$0xff]
  %vm53 = vcmask 261120
  %v54 = vsel %vm53, %v51, -inf
  %55 = vmax.xlane.f32.xlu0 %v54
  %v56 = vpop.xlane.xlu0 %55
  %v57 = vsub.f32 %v51, %v56
  %v58 = vmul.f32 %v57, 1.442695
  %v59 = vpow.pop %v58
  %v60 = vsel %vm53, %v59, 0.0
  %61 = vadd.xlane.f32.xlu0 %v60
  %v62 = vpop.xlane.xlu0 %61
  %v63 = vlog2.pop %v62
  %v64 = vmul.f32 %v63, 0.6931472
  %v65 = vlaneseq
  %v66 = vand.u32 %v65, 127
  %67 = vset.pattern.permute.xlu0 0
  %68 = vperm.xlu0 %67, %v52
  %v69 = vpop.permute.xlu0 %68
  %vm70 = vcmp.eq.s32.totalorder %v66, %v69
  %v71 = vsel %vm70, 0.903125, 0.003125
  %v72 = vmul.f32 %v71, %v57
  %v73 = vsel %vm53, %v72, 0.0
  %74 = vadd.xlane.f32.xlu0 %v73
  %v75 = vpop.xlane.xlu0 %74
  %v76 = vsub.f32 %v64, %v75
  %s77 = sadd.s32 0, 0
  %s78 = smul.u32 %s77, 8
  %v79 = vlaneseq
  %v80 = vshrl.u32 %v79, 7
  %v81 = vstv %s78
  %v82 = vadd.s32 %v80, %v81
  %vm83 = vcmp.lt.s32.totalorder %v82, 8
  %v84 = vsel %vm83, %v76, 0.0
  %v85 = vld [vmem:[%s2] sm:$0xff]
  %v86 = vadd.f32 %v85, %v84
  %vm87 = vcmask 7168
  %88 = vst.msk [vmem:[%s2] sm:$0xff] %vm87, %v86
  // Predicated region
  $region14: #{tpu_custom_call.1} parent=0 // pred_check
    _
  $region15: #{tpu_custom_call.1} parent=0 // pred_check_branch
    %90 = sbr.rel (0) target = $region17
  $region16: #{tpu_custom_call.1} parent=0 // pred_region
    _
  $region17: #{tpu_custom_call.1} parent=0 // pred_fallthru
    _
  // Predicated region
  $region18: #{tpu_custom_call.1} parent=0 // pred_check
    _
  $region19: #{tpu_custom_call.1} parent=0 // pred_check_branch
    %92 = sbr.rel (0) target = $region21
  $region20: #{tpu_custom_call.1} parent=0 // pred_region
    _
  $region21: #{tpu_custom_call.1} parent=0 // pred_fallthru
    _

</llo_original>
